<compile_context>
chip_gen: v6e
topology: v6e:2x2x1
jax: 0.10.0
libtpu: 0.0.40
codegen_flags: <defaults>
</compile_context>

<pallas_src>
import jax
import jax.numpy as jnp
from jax.experimental import pallas as pl
from jax.experimental.pallas import tpu as pltpu


def highway_kernel(x1_ref, x2_ref, wt_ref, b_ref, o_ref):
    x1 = x1_ref[...]
    x2 = x2_ref[...]
    # Linear: x1 @ W.T + b, with wT pre-transposed in the wrapper -> canonical
    # MXU matmul, f32 accumulation.
    z = jnp.dot(x1, wt_ref[...], preferred_element_type=jnp.float32)
    gate = jax.nn.sigmoid(z + b_ref[...].astype(jnp.float32))

    if x1.dtype == jnp.bfloat16:
        # bf16 VPU is native on v6e/v7x: keep the blend in bf16, cast gate once.
        g = gate.astype(jnp.bfloat16)
        o_ref[...] = (x1 + g * (x2 - x1)).astype(o_ref.dtype)
    else:
        x1f = x1.astype(jnp.float32)
        x2f = x2.astype(jnp.float32)
        # out = gate*x2 + (1-gate)*x1  ==  x1 + gate*(x2 - x1)
        o_ref[...] = (x1f + gate * (x2f - x1f)).astype(o_ref.dtype)


def _vmem_capacity_bytes():
    try:
        return int(pltpu.get_tpu_info().vmem_capacity_bytes)
    except Exception:
        return 128 << 20  # conservative default (v5e/v6e)


def highway(x1, x2, w, b, *, tm=None):
    """x1, x2: (N, H);  w: (H, H) torch-Linear layout (out, in);  b: (H,)."""
    N, H = x1.shape
    assert x2.shape == (N, H) and w.shape == (H, H) and b.shape == (H,)

    x_itemsize = jnp.dtype(x1.dtype).itemsize
    w_itemsize = jnp.dtype(w.dtype).itemsize
    b_itemsize = jnp.dtype(b.dtype).itemsize

    # One-time transpose in the wrapper (constant-folded for real weights);
    # the O(H^2) cost is negligible vs the O(N*H) streamed traffic.
    wt = w.T                      # (H_in, H_out)
    b2d = b.reshape(1, H)

    # dtype-aware sublane packing: 8 rows f32, 16 bf16, 32 int8/fp8.
    sub = {4: 8, 2: 16, 1: 32}.get(x_itemsize, 8)

    vmem_cap = _vmem_capacity_bytes()
    vmem_budget = int(vmem_cap * 0.8)          # headroom for compiler scratch

    h_pad = pl.cdiv(H, 128) * 128
    resident = H * h_pad * w_itemsize + 8 * h_pad * b_itemsize   # single-buffered
    per_row = 3 * 2 * H * x_itemsize           # x1/x2/out streams, double-buffered

    if tm is None:
        avail = vmem_budget - resident
        tm = avail // per_row if avail > 0 else sub
        tm = min(tm, 1024)                      # ~86% of HBM roofline by 1024 rows
        # Keep >= 4 grid steps when N allows: pipelining depth + both v7x TCs busy.
        tm = min(tm, max(pl.cdiv(N, 4), sub))
        tm = max(tm, sub)
    tm = int(min(tm, N))
    if tm < N:
        tm = max((tm // sub) * sub, min(sub, N))   # sublane-aligned unless full dim

    grid = (pl.cdiv(N, tm),)

    # VMEM request: double-buffered streams + single-buffered resident W/b + slack.
    vmem_bytes = 2 * 3 * tm * h_pad * x_itemsize + resident + (2 << 20)
    vmem_bytes = int(max(min(vmem_bytes, vmem_budget), 1 << 20))

    cost = pl.CostEstimate(
        flops=2 * N * H * H,
        transcendentals=N * H,                  # sigmoid (EUP exp)
        bytes_accessed=3 * N * H * x_itemsize + H * H * w_itemsize + H * b_itemsize,
    )

    return pl.pallas_call(
        highway_kernel,
        out_shape=jax.ShapeDtypeStruct((N, H), x1.dtype),
        grid_spec=pl.GridSpec(
            grid=grid,
            in_specs=[
                pl.BlockSpec((tm, H), lambda i: (i, 0)),   # x1 (streamed)
                pl.BlockSpec((tm, H), lambda i: (i, 0)),   # x2 (streamed)
                pl.BlockSpec((H, H), lambda i: (0, 0),     # W.T (resident, 1-buffered)
                             pipeline_mode=pl.Buffered(1)),
                pl.BlockSpec((1, H), lambda i: (0, 0),     # b   (resident, 1-buffered)
                             pipeline_mode=pl.Buffered(1)),
            ],
            out_specs=pl.BlockSpec((tm, H), lambda i: (i, 0)),
        ),
        compiler_params=pltpu.CompilerParams(
            dimension_semantics=("parallel",),
            vmem_limit_bytes=vmem_bytes,
        ),
        cost_estimate=cost,
    )(x1, x2, wt, b2d)


if __name__ == "__main__":
    key = jax.random.PRNGKey(0)
    k1, k2, k3, k4 = jax.random.split(key, 4)

    N, H = 64, 32                            # small demo shapes (hidden=32)
    x1 = jax.random.normal(k1, (N, H), dtype=jnp.float32)
    x2 = jax.random.normal(k2, (N, H), dtype=jnp.float32)

    # Deterministic params (mimics nn.Linear uniform(-1/sqrt(H), 1/sqrt(H)))
    bound = 1.0 / jnp.sqrt(jnp.float32(H))
    w = jax.random.uniform(k3, (H, H), minval=-bound, maxval=bound, dtype=jnp.float32)
    b = jax.random.uniform(k4, (H,), minval=-bound, maxval=bound, dtype=jnp.float32)

    # Pure-JAX reference
    gate_ref = jax.nn.sigmoid(x1 @ w.T + b)
    ref = gate_ref * x2 + (1.0 - gate_ref) * x1

    # 1) Explicit small row tile -> grid of 4, exercises streaming/pipelining.
    out = jax.block_until_ready(highway(x1, x2, w, b, tm=16))
    assert out.shape == (N, H)
    assert jnp.allclose(out, ref, atol=1e-5, rtol=1e-5)

    # 2) Auto-sized tile path (tm=None, generation-aware VMEM budget).
    out2 = jax.block_until_ready(highway(x1, x2, w, b))
    assert jnp.allclose(out2, ref, atol=1e-5, rtol=1e-5)

    # 3) bf16 streaming path: blend in bf16, matmul/sigmoid in f32.
    x1b = x1.astype(jnp.bfloat16)
    x2b = x2.astype(jnp.bfloat16)
    wb = w.astype(jnp.bfloat16)
    bb = b.astype(jnp.bfloat16)
    gate_b = jax.nn.sigmoid(
        x1b.astype(jnp.float32) @ wb.astype(jnp.float32).T + bb.astype(jnp.float32)
    )
    ref_b = gate_b * x2b.astype(jnp.float32) + (1.0 - gate_b) * x1b.astype(jnp.float32)
    out3 = jax.block_until_ready(highway(x1b, x2b, wb, bb))
    assert out3.dtype == jnp.bfloat16
    assert jnp.allclose(out3.astype(jnp.float32), ref_b, atol=6e-2, rtol=6e-2)

    print("KERNEL_OK")
</pallas_src>

<mosaic_0001>
module attributes {stable_mosaic.version = 11 : i64} {
  func.func @highway_kernel(%arg0: i32, %arg1: memref<16x32xf32, #tpu.memory_space<vmem>>, %arg2: memref<16x32xf32, #tpu.memory_space<vmem>>, %arg3: memref<32x32xf32, #tpu.memory_space<vmem>>, %arg4: memref<1x32xf32, #tpu.memory_space<vmem>>, %arg5: memref<16x32xf32, #tpu.memory_space<vmem>>) attributes {dimension_semantics = [#tpu.dimension_semantics<parallel>], iteration_bounds = array<i64: 4>, scalar_prefetch = 0 : i64, scratch_operands = 0 : i64, tpu.core_type = #tpu.core_type<tc>, window_params = [{transform_indices = @transform_0, window_bounds = array<i64: 16, 32>}, {transform_indices = @transform_1, window_bounds = array<i64: 16, 32>}, {pipeline_mode = #tpu.pipeline_mode<synchronous>, transform_indices = @transform_2, window_bounds = array<i64: 32, 32>}, {pipeline_mode = #tpu.pipeline_mode<synchronous>, transform_indices = @transform_3, window_bounds = array<i64: 1, 32>}, {transform_indices = @transform_4, window_bounds = array<i64: 16, 32>}]} {
    %c0 = arith.constant 0 : index
    %c0_0 = arith.constant 0 : index
    %0 = vector.load %arg1[%c0, %c0_0] : memref<16x32xf32, #tpu.memory_space<vmem>>, vector<16x32xf32>
    %c0_1 = arith.constant 0 : index
    %c0_2 = arith.constant 0 : index
    %1 = vector.load %arg2[%c0_1, %c0_2] : memref<16x32xf32, #tpu.memory_space<vmem>>, vector<16x32xf32>
    %c0_3 = arith.constant 0 : index
    %c0_4 = arith.constant 0 : index
    %2 = vector.load %arg3[%c0_3, %c0_4] : memref<32x32xf32, #tpu.memory_space<vmem>>, vector<32x32xf32>
    %cst = arith.constant dense<0.000000e+00> : vector<16x32xf32>
    %3 = tpu.matmul %0, %2, %cst {dimension_numbers = #tpu.dot_dimension_numbers<[1], [0], [0], [1], [0, 0, 1, 1], [], []>} : vector<16x32xf32>, vector<32x32xf32>, vector<16x32xf32> -> vector<16x32xf32>
    %c0_5 = arith.constant 0 : index
    %c0_6 = arith.constant 0 : index
    %4 = vector.load %arg4[%c0_5, %c0_6] : memref<1x32xf32, #tpu.memory_space<vmem>>, vector<1x32xf32>
    %5 = vector.broadcast %4 : vector<1x32xf32> to vector<16x32xf32>
    %6 = arith.addf %3, %5 : vector<16x32xf32>
    %7 = arith.negf %6 : vector<16x32xf32>
    %8 = math.exp %7 : vector<16x32xf32>
    %cst_7 = arith.constant 1.000000e+00 : f32
    %9 = vector.broadcast %cst_7 : f32 to vector<16x32xf32>
    %10 = arith.addf %9, %8 : vector<16x32xf32>
    %11 = arith.divf %9, %10 : vector<16x32xf32>
    %12 = arith.subf %1, %0 : vector<16x32xf32>
    %13 = arith.mulf %11, %12 : vector<16x32xf32>
    %14 = arith.addf %0, %13 : vector<16x32xf32>
    %c0_8 = arith.constant 0 : index
    %c0_9 = arith.constant 0 : index
    %15 = vector.load %arg5[%c0_8, %c0_9] : memref<16x32xf32, #tpu.memory_space<vmem>>, vector<16x32xf32>
    tpu.vector_store %arg5[%c0_8, %c0_9], %14 {strides = array<i32>} : memref<16x32xf32, #tpu.memory_space<vmem>>, vector<16x32xf32>,
    return
  }
  func.func @transform_0(%arg0: i32) -> (i32, i32) {
    %c0_i32 = arith.constant 0 : i32
    %c0_i32_0 = arith.constant 0 : i32
    return %arg0, %c0_i32 : i32, i32
  }
  func.func @transform_1(%arg0: i32) -> (i32, i32) {
    %c0_i32 = arith.constant 0 : i32
    %c0_i32_0 = arith.constant 0 : i32
    return %arg0, %c0_i32 : i32, i32
  }
  func.func @transform_2(%arg0: i32) -> (i32, i32) {
    %c0_i32 = arith.constant 0 : i32
    %c0_i32_0 = arith.constant 0 : i32
    %c0_i32_1 = arith.constant 0 : i32
    return %c0_i32, %c0_i32_0 : i32, i32
  }
  func.func @transform_3(%arg0: i32) -> (i32, i32) {
    %c0_i32 = arith.constant 0 : i32
    %c0_i32_0 = arith.constant 0 : i32
    %c0_i32_1 = arith.constant 0 : i32
    return %c0_i32, %c0_i32_0 : i32, i32
  }
  func.func @transform_4(%arg0: i32) -> (i32, i32) {
    %c0_i32 = arith.constant 0 : i32
    %c0_i32_0 = arith.constant 0 : i32
    return %arg0, %c0_i32 : i32, i32
  }
}

</mosaic_0001>

<llo_original>
// kernel: tpu_custom_call.1
$region0: #{tpu_custom_call.1}
  #allocation0 [shape = 'u32[]', space=smem, size = 0x4, offset = 0x4, fixed_abs, tag = 'smem constant byte address 0x4 - core index']
  #allocation1 [shape = 'u32[144,128]{1,0:T(1,128)}', space=vmem, size = 0x12000, scoped, tag = 'internal scratch']
  %s0 = inlined_call_operand.vmem [shape: f32[64,32], index: 0, kind: input, shape index: {}]
  %s1 = inlined_call_operand.vmem [shape: f32[64,32], index: 1, kind: input, shape index: {}]
  %s2 = inlined_call_operand.vmem [shape: f32[32,32], index: 2, kind: input, shape index: {}]
  %s3 = inlined_call_operand.vmem [shape: f32[1,32], index: 3, kind: input, shape index: {}]
  %s4 = inlined_call_operand.vmem [shape: f32[64,32], index: 4, kind: output, shape index: {}]
  %s5 = sld [smem:[#allocation0]]
  $region49: #{tpu_custom_call.1} parent=0
    _
  %s7 = ssub.s32 1, %s5
  %s8 = scalar_select 0, %s7, %s5
  loop: start=0, step=1, limit=6
  $region2: #{tpu_custom_call.1} parent=0 // loop_pre_header
    _
  $region3: #{tpu_custom_call.1} parent=0 // loop_header
    %s10 = sphi 0, %s14
    %p11 = scmp.ge.s32.totalorder %s10, 6
    %s20 = sphi 0, %s22
    %s23 = sphi 0, %s20
    %s24 = sphi 0, %s23
    %s40 = sphi 0, %s24
    %s46 = sphi 0, %s48
    %s49 = sphi 0, %s46
    %s50 = sphi 0, %s49
    %s66 = sphi 0, %s50
    %s70 = sphi 0, %s70
    %s72 = sphi 0, %s70
    %s73 = sphi 0, %s72
    %s87 = sphi 0, %s73
    %s91 = sphi 0, %s91
    %s93 = sphi 0, %s91
    %s94 = sphi 0, %s93
    %s108 = sphi 0, %s94
    %s114 = sphi 0, %s116
    %s117 = sphi 0, %s114
    %s118 = sphi 0, %s117
    %s134 = sphi 0, %s118
  $region4: #{tpu_custom_call.1} parent=0 // loop_header_branch
    %13 = sbr.rel (%p11) target = $region8
  $region5: #{tpu_custom_call.1} parent=0 // loop_body
    %s15 = ssub.s32 %s10, 1
    %s16 = ssub.s32 %s10, 2
    %s17 = sadd.s32 %s10, 1
    %s18 = ssub.s32 %s10, %s17
    %p19 = scmp.eq.s32.totalorder %s18, 0
    %s21 = sadd.s32 %s20, 1
    %s22 = scalar_select %p19, %s20, %s21
    %p25 = pneg %p19
    %p26 = scmp.eq.s32.totalorder %s10, 3
    %p27 = por %p25, %p26
    %p28 = scmp.ne.s32.totalorder %s20, %s23
    %p29 = scmp.eq.s32.totalorder %s10, 0
    %p30 = por %p28, %p29
    %p31 = scmp.ne.s32.totalorder %s20, %s23
    %p32 = scmp.eq.s32.totalorder %s15, 3
    %p33 = por %p31, %p32
    %p34 = scmp.ne.s32.totalorder %s23, %s24
    %p35 = scmp.eq.s32.totalorder %s15, 0
    %p36 = por %p34, %p35
    %p37 = scmp.ne.s32.totalorder %s23, %s24
    %p38 = scmp.eq.s32.totalorder %s16, 3
    %p39 = por %p37, %p38
    %p41 = scmp.ne.s32.totalorder %s24, %s40
    %p42 = scmp.eq.s32.totalorder %s16, 0
    %p43 = por %p41, %p42
    %s44 = ssub.s32 %s10, %s17
    %p45 = scmp.eq.s32.totalorder %s44, 0
    %s47 = sadd.s32 %s46, 1
    %s48 = scalar_select %p45, %s46, %s47
    %p51 = pneg %p45
    %p52 = scmp.eq.s32.totalorder %s10, 3
    %p53 = por %p51, %p52
    %p54 = scmp.ne.s32.totalorder %s46, %s49
    %p55 = scmp.eq.s32.totalorder %s10, 0
    %p56 = por %p54, %p55
    %p57 = scmp.ne.s32.totalorder %s46, %s49
    %p58 = scmp.eq.s32.totalorder %s15, 3
    %p59 = por %p57, %p58
    %p60 = scmp.ne.s32.totalorder %s49, %s50
    %p61 = scmp.eq.s32.totalorder %s15, 0
    %p62 = por %p60, %p61
    %p63 = scmp.ne.s32.totalorder %s49, %s50
    %p64 = scmp.eq.s32.totalorder %s16, 3
    %p65 = por %p63, %p64
    %p67 = scmp.ne.s32.totalorder %s50, %s66
    %p68 = scmp.eq.s32.totalorder %s16, 0
    %p69 = por %p67, %p68
    %s71 = sadd.s32 %s70, 1
    %p74 = scmp.eq.s32.totalorder %s10, 3
    %p75 = scmp.ne.s32.totalorder %s70, %s72
    %p76 = scmp.eq.s32.totalorder %s10, 0
    %p77 = por %p75, %p76
    %p78 = scmp.ne.s32.totalorder %s70, %s72
    %p79 = scmp.eq.s32.totalorder %s15, 3
    %p80 = por %p78, %p79
    %p81 = scmp.ne.s32.totalorder %s72, %s73
    %p82 = scmp.eq.s32.totalorder %s15, 0
    %p83 = por %p81, %p82
    %p84 = scmp.ne.s32.totalorder %s72, %s73
    %p85 = scmp.eq.s32.totalorder %s16, 3
    %p86 = por %p84, %p85
    %p88 = scmp.ne.s32.totalorder %s73, %s87
    %p89 = scmp.eq.s32.totalorder %s16, 0
    %p90 = por %p88, %p89
    %s92 = sadd.s32 %s91, 1
    %p95 = scmp.eq.s32.totalorder %s10, 3
    %p96 = scmp.ne.s32.totalorder %s91, %s93
    %p97 = scmp.eq.s32.totalorder %s10, 0
    %p98 = por %p96, %p97
    %p99 = scmp.ne.s32.totalorder %s91, %s93
    %p100 = scmp.eq.s32.totalorder %s15, 3
    %p101 = por %p99, %p100
    %p102 = scmp.ne.s32.totalorder %s93, %s94
    %p103 = scmp.eq.s32.totalorder %s15, 0
    %p104 = por %p102, %p103
    %p105 = scmp.ne.s32.totalorder %s93, %s94
    %p106 = scmp.eq.s32.totalorder %s16, 3
    %p107 = por %p105, %p106
    %p109 = scmp.ne.s32.totalorder %s94, %s108
    %p110 = scmp.eq.s32.totalorder %s16, 0
    %p111 = por %p109, %p110
    %s112 = ssub.s32 %s10, %s17
    %p113 = scmp.eq.s32.totalorder %s112, 0
    %s115 = sadd.s32 %s114, 1
    %s116 = scalar_select %p113, %s114, %s115
    %p119 = pneg %p113
    %p120 = scmp.eq.s32.totalorder %s10, 3
    %p121 = por %p119, %p120
    %p122 = scmp.ne.s32.totalorder %s114, %s117
    %p123 = scmp.eq.s32.totalorder %s10, 0
    %p124 = por %p122, %p123
    %p125 = scmp.ne.s32.totalorder %s114, %s117
    %p126 = scmp.eq.s32.totalorder %s15, 3
    %p127 = por %p125, %p126
    %p128 = scmp.ne.s32.totalorder %s117, %s118
    %p129 = scmp.eq.s32.totalorder %s15, 0
    %p130 = por %p128, %p129
    %p131 = scmp.ne.s32.totalorder %s117, %s118
    %p132 = scmp.eq.s32.totalorder %s16, 3
    %p133 = por %p131, %p132
    %p135 = scmp.ne.s32.totalorder %s118, %s134
    %p136 = scmp.eq.s32.totalorder %s16, 0
    %p137 = por %p135, %p136
    %p138 = scmp.le.s32.totalorder 1, %s10
    %p139 = scmp.lt.s32.totalorder %s10, 5
    %p140 = pnand %p138, %p139
    %p141 = pneg %p140
    // Predicated region
    $region9: #{tpu_custom_call.1} parent=5 // pred_check
      _
    $region10: #{tpu_custom_call.1} parent=5 // pred_check_branch
      %143 = sbr.rel (%p140) target = $region12
    $region11: #{tpu_custom_call.1} parent=5 // pred_region
      %s144 = ssub.s32 %s10, 1
      // Predicated region
      $region13: #{tpu_custom_call.1} parent=11 // pred_check
        %p145 = pneg %p83
      $region14: #{tpu_custom_call.1} parent=11 // pred_check_branch
        %147 = sbr.rel (%p145) target = $region16
      $region15: #{tpu_custom_call.1} parent=11 // pred_region
        _
      $region16: #{tpu_custom_call.1} parent=11 // pred_fallthru
        _
      // Predicated region
      $region17: #{tpu_custom_call.1} parent=11 // pred_check
        %p148 = pneg %p104
      $region18: #{tpu_custom_call.1} parent=11 // pred_check_branch
        %150 = sbr.rel (%p148) target = $region20
      $region19: #{tpu_custom_call.1} parent=11 // pred_region
        _
      $region20: #{tpu_custom_call.1} parent=11 // pred_fallthru
        _
    $region12: #{tpu_custom_call.1} parent=5 // pred_fallthru
      _
    %p151 = scmp.lt.s32.totalorder %s10, 4
    // Predicated region
    $region21: #{tpu_custom_call.1} parent=5 // pred_check
      %p152 = pneg %p151
    $region22: #{tpu_custom_call.1} parent=5 // pred_check_branch
      %154 = sbr.rel (%p152) target = $region24
    $region23: #{tpu_custom_call.1} parent=5 // pred_region
      // Predicated region
      $region25: #{tpu_custom_call.1} parent=23 // pred_check
        %p155 = pneg %p30
      $region26: #{tpu_custom_call.1} parent=23 // pred_check_branch
        %157 = sbr.rel (%p155) target = $region28
      $region27: #{tpu_custom_call.1} parent=23 // pred_region
        %s158 = smul.u32 2, %s10
        %p159 = scmp.lt.s32.totalorder %s158, 7
        %s160 = scalar_select %p159, %s158, 7
        %s161 = smul.addr %s160, 8
        %s162 = scalar_lea.vmem %s0, %s161
        %s163 = smul.u32 2, %s10
      $region28: #{tpu_custom_call.1} parent=23 // pred_fallthru
        _
      // Predicated region
      $region29: #{tpu_custom_call.1} parent=23 // pred_check
        %p164 = pneg %p56
      $region30: #{tpu_custom_call.1} parent=23 // pred_check_branch
        %166 = sbr.rel (%p164) target = $region32
      $region31: #{tpu_custom_call.1} parent=23 // pred_region
        %s167 = smul.u32 2, %s10
        %p168 = scmp.lt.s32.totalorder %s167, 7
        %s169 = scalar_select %p168, %s167, 7
        %s170 = smul.addr %s169, 8
        %s171 = scalar_lea.vmem %s1, %s170
        %s172 = smul.u32 2, %s10
      $region32: #{tpu_custom_call.1} parent=23 // pred_fallthru
        _
    $region24: #{tpu_custom_call.1} parent=5 // pred_fallthru
      _
    %p173 = scmp.le.s32.totalorder 1, %s10
    %p174 = scmp.lt.s32.totalorder %s10, 5
    %p175 = pnand %p173, %p174
    %p176 = pneg %p175
    // Predicated region
    $region33: #{tpu_custom_call.1} parent=5 // pred_check
      _
    $region34: #{tpu_custom_call.1} parent=5 // pred_check_branch
      %178 = sbr.rel (%p175) target = $region36
    $region35: #{tpu_custom_call.1} parent=5 // pred_region
      %s179 = ssub.s32 %s10, 1
      %s180 = smul.u32 2, %s15
      %p181 = scmp.lt.s32.totalorder %s180, 7
      %s182 = scalar_select %p181, %s180, 7
      %s183 = smul.addr %s182, 8
      %s184 = scalar_lea.vmem %s0, %s183
      %p185 = pneg %p36
      %p186 = pneg %p33
      %s187 = smul.u32 2, %s15
      %p188 = scmp.lt.s32.totalorder %s187, 7
      %s189 = scalar_select %p188, %s187, 7
      %s190 = smul.addr %s189, 8
      %s191 = scalar_lea.vmem %s1, %s190
      %p192 = pneg %p62
      %p193 = pneg %p59
      %p194 = pneg %p83
      %p195 = pneg %p80
      %p196 = pneg %p104
      %p197 = pneg %p101
      %p198 = pneg %p130
      %p199 = pneg %p127
      %s200 = smul.u32 2, %s15
      %p201 = scmp.lt.s32.totalorder %s200, 7
      %s202 = scalar_select %p201, %s200, 7
      %s203 = smul.addr %s202, 8
      %s204 = scalar_lea.vmem %s4, %s203
      %s205 = smul.u32 2, %s15
      %p206 = scmp.lt.s32.totalorder %s205, 7
      %s207 = scalar_select %p206, %s205, 7
      %s208 = smul.addr %s207, 8
      %s209 = scalar_lea.vmem %s0, %s208
      %s210 = smul.u32 2, %s15
      %s211 = smul.u32 2, %s15
      %p212 = scmp.lt.s32.totalorder %s211, 7
      %s213 = scalar_select %p212, %s211, 7
      %s214 = smul.addr %s213, 8
      %s215 = scalar_lea.vmem %s1, %s214
      %s216 = smul.u32 2, %s15
      %s217 = smul.u32 2, %s15
      %p218 = scmp.lt.s32.totalorder %s217, 7
      %s219 = scalar_select %p218, %s217, 7
      %s220 = smul.addr %s219, 8
      %s221 = scalar_lea.vmem %s4, %s220
      %s222 = smul.u32 2, %s15
      %v223 = vld [vmem:[%s209] sm:$0xff]
      %v224 = vld [vmem:[%s209 + $0x8] sm:$0xff]
      %v225 = vld [vmem:[%s215] sm:$0xff]
      %v226 = vld [vmem:[%s215 + $0x8] sm:$0xff]
      %v227 = vld [vmem:[%s2] sm:$0xff]
      %v228 = vld [vmem:[%s2 + $0x8] sm:$0xff]
      %v229 = vld [vmem:[%s2 + $0x10] sm:$0xff]
      %v230 = vld [vmem:[%s2 + $0x18] sm:$0xff]
      %v231 = vld [vmem:[%s3] sm:$0x1]
      %v233 = vlaneseq
      %v234 = vshrl.u32 %v233, 7
      %v235 = vsub.s32 0, %v234
      %v236 = vrot.slane %v231, %v235
      %vm238 = vcmask 261120
      %v240 = vsel %vm238, %v223, 0
      %v243 = vsel %vm238, %v224, 0
      %245 = vmatprep.subr.mxu0 0.0
      %246 = vmatpush1.msra.mxu0 0.0
      %247 = vmatprep.subr.mxu0 0.0
      %248 = vmatpush1.msra.mxu0 0.0
      %249 = vmatprep.subr.mxu0 0.0
      %250 = vmatpush1.msra.mxu0 0.0
      %251 = vmatprep.subr.mxu0 0.0
      %252 = vmatpush1.msra.mxu0 0.0
      %253 = vmatprep.subr.mxu0 0.0
      %254 = vmatpush1.msra.mxu0 0.0
      %255 = vmatprep.subr.mxu0 0.0
      %256 = vmatpush1.msra.mxu0 0.0
      %257 = vmatprep.subr.mxu0 0.0
      %258 = vmatpush1.msra.mxu0 0.0
      %259 = vmatprep.subr.mxu0 0.0
      %260 = vmatpush1.msra.mxu0 0.0
      %261 = vmatprep.subr.mxu0 0.0
      %262 = vmatpush1.msra.mxu0 0.0
      %263 = vmatprep.subr.mxu0 0.0
      %264 = vmatpush1.msra.mxu0 0.0
      %265 = vmatprep.subr.mxu0 0.0
      %266 = vmatpush1.msra.mxu0 0.0
      %267 = vmatprep.subr.mxu0 0.0
      %268 = vmatpush1.msra.mxu0 0.0
      %269 = vmatprep.subr.mxu0 0.0
      %270 = vmatpush1.msra.mxu0 %v230
      %271 = vmatprep.subr.mxu0 0.0
      %272 = vmatpush1.msra.mxu0 %v229
      %273 = vmatprep.subr.mxu0 0.0
      %274 = vmatpush1.msra.mxu0 %v228
      %275 = vmatprep.subr.mxu0 0.0
      %276 = vmatpush1.msra.mxu0 %v227
      %277 = vmatprep.subr.mxu0 0.0
      %278 = vmatpush2.msra.mxu0 0.0
      %279 = vmatprep.subr.mxu0 0.0
      %280 = vmatpush2.msra.mxu0 0.0
      %281 = vmatprep.subr.mxu0 0.0
      %282 = vmatpush2.msra.mxu0 0.0
      %283 = vmatprep.subr.mxu0 0.0
      %284 = vmatpush2.msra.mxu0 0.0
      %285 = vmatprep.subr.mxu0 0.0
      %286 = vmatpush2.msra.mxu0 0.0
      %287 = vmatprep.subr.mxu0 0.0
      %288 = vmatpush2.msra.mxu0 0.0
      %289 = vmatprep.subr.mxu0 0.0
      %290 = vmatpush2.msra.mxu0 0.0
      %291 = vmatprep.subr.mxu0 0.0
      %292 = vmatpush2.msra.mxu0 0.0
      %293 = vmatprep.subr.mxu0 0.0
      %294 = vmatpush2.msra.mxu0 0.0
      %295 = vmatprep.subr.mxu0 0.0
      %296 = vmatpush2.msra.mxu0 0.0
      %297 = vmatprep.subr.mxu0 0.0
      %298 = vmatpush2.msra.mxu0 0.0
      %299 = vmatprep.subr.mxu0 0.0
      %300 = vmatpush2.msra.mxu0 0.0
      %301 = vmatprep.subr.mxu0 0.0
      %302 = vmatpush2.msra.mxu0 0.0
      %303 = vmatprep.subr.mxu0 0.0
      %304 = vmatpush2.msra.mxu0 0.0
      %305 = vmatprep.subr.mxu0 0.0
      %306 = vmatpush2.msra.mxu0 0.0
      %307 = vmatprep.subr.mxu0 0.0
      %308 = vmatpush2.msra.mxu0 0.0
      %309 = vmatprep.mubr.f32.mxu0 0.0
      %310 = vmatmul.mubr.f32.gmra.mxu0 %v240
      %v311 = vpop.f32.mrf.mxu0
      %v312 = vadd.f32 %v236, %v311
      %v313 = vpop.f32.mrf.mxu0
      %314 = vmatprep.mubr.f32.mxu0 0.0
      %315 = vmatmul.mubr.f32.gmra.mxu0 %v243
      %v316 = vpop.f32.mrf.mxu0
      %v317 = vadd.f32 %v236, %v316
      %v318 = vpop.f32.mrf.mxu0
      %319 = vdwg.mxu0
      %v320 = vxor.u32 %v312, 2147483648
      %v321 = vxor.u32 %v317, 2147483648
      %v322 = vmul.f32 %v320, 1.442695
      %v323 = vpow.pop %v322
      %v324 = vmul.f32 %v321, 1.442695
      %v325 = vpow.pop %v324
      %v326 = vadd.f32 %v323, 1.0
      %v327 = vadd.f32 %v325, 1.0
      %v328 = vrcp.pop %v326
      %v329 = vmul.f32 1.0, %v328
      %v330 = vrcp.pop %v327
      %v331 = vmul.f32 1.0, %v330
      %v332 = vsub.f32 %v225, %v223
      %v333 = vsub.f32 %v226, %v224
      %v334 = vmul.f32 %v329, %v332
      %v335 = vmul.f32 %v331, %v333
      %v336 = vadd.f32 %v223, %v334
      %v337 = vadd.f32 %v224, %v335
      %338 = vst.msk [vmem:[%s221] sm:$0xff] %vm238, %v336
      %339 = vst.msk [vmem:[%s221 + $0x8] sm:$0xff] %vm238, %v337
      %s340 = smul.u32 2, %s15
      %p341 = scmp.lt.s32.totalorder %s340, 7
      %s342 = scalar_select %p341, %s340, 7
      %s343 = smul.addr %s342, 8
      %s344 = scalar_lea.vmem %s4, %s343
      // Predicated region
      $region37: #{tpu_custom_call.1} parent=35 // pred_check
        %p345 = pneg %p127
      $region38: #{tpu_custom_call.1} parent=35 // pred_check_branch
        %347 = sbr.rel (%p345) target = $region40
      $region39: #{tpu_custom_call.1} parent=35 // pred_region
        %s348 = smul.u32 2, %s15
      $region40: #{tpu_custom_call.1} parent=35 // pred_fallthru
        _
    $region36: #{tpu_custom_call.1} parent=5 // pred_fallthru
      _
    %p349 = scmp.le.s32.totalorder 2, %s10
    // Predicated region
    $region41: #{tpu_custom_call.1} parent=5 // pred_check
      %p350 = pneg %p349
    $region42: #{tpu_custom_call.1} parent=5 // pred_check_branch
      %352 = sbr.rel (%p350) target = $region44
    $region43: #{tpu_custom_call.1} parent=5 // pred_region
      %s353 = ssub.s32 %s10, 2
      // Predicated region
      $region45: #{tpu_custom_call.1} parent=43 // pred_check
        %p354 = pneg %p133
      $region46: #{tpu_custom_call.1} parent=43 // pred_check_branch
        %356 = sbr.rel (%p354) target = $region48
      $region47: #{tpu_custom_call.1} parent=43 // pred_region
        %s357 = smul.u32 2, %s16
        %p358 = scmp.lt.s32.totalorder %s357, 7
        %s359 = scalar_select %p358, %s357, 7
        %s360 = smul.addr %s359, 8
        %s361 = scalar_lea.vmem %s4, %s360
      $region48: #{tpu_custom_call.1} parent=43 // pred_fallthru
        _
    $region44: #{tpu_custom_call.1} parent=5 // pred_fallthru
      _
  $region6: #{tpu_custom_call.1} parent=0 // loop_footer
    %s14 = sadd.s32 1, %s10
  $region7: #{tpu_custom_call.1} parent=0 // loop_footer_branch
    %9 = sbr.rel target = $region3
  $region8: #{tpu_custom_call.1} parent=0 // loop_exit
    _

</llo_original>
